<compile_context>
chip_gen: v7x
topology: tpu7x:2x2x1
jax: 0.10.0
libtpu: 0.0.40
codegen_flags: <defaults>
</compile_context>

<pallas_src>
import jax
import jax.numpy as jnp
from jax import lax
from jax.experimental import pallas as pl
from jax.experimental.pallas import tpu as pltpu


def _bimap_bn_kernel(xbd_ref, wbig_ref, tbd_ref, o_ref):
    # One grid step == one batch sample. Everything here is a dense 2-D MXU matmul.
    x = xbd_ref[0]        # (C_in*di, C_in*di)   block-diagonal X for this sample
    w = wbig_ref[...]     # (C_in*di, C_out*do)  stacked BiMap weights
    t = tbd_ref[...]      # (C_out*do, C_out*do) block-diagonal BN transform T

    # Q = W^T Xbd W   -> diagonal (do x do) blocks are the BiMap outputs P[co]
    wtx = lax.dot_general(w, x, (((0,), (0,)), ((), ())),
                          preferred_element_type=jnp.float32).astype(w.dtype)
    q = lax.dot_general(wtx, w, (((1,), (0,)), ((), ())),
                        preferred_element_type=jnp.float32).astype(t.dtype)

    # R = Tbd Q Tbd^T -> diagonal blocks are T P[co] T^T (BatchNormSPD, eval mode)
    tq = lax.dot_general(t, q, (((1,), (0,)), ((), ())),
                         preferred_element_type=jnp.float32).astype(t.dtype)
    r = lax.dot_general(tq, t, (((1,), (1,)), ((), ())),
                        preferred_element_type=jnp.float32)

    o_ref[0] = r.astype(o_ref.dtype)


def bimap_bn_forward(x, W, T, *, compute_dtype=jnp.float32):
    """x: (N, C_in, di, di), W: (C_out, C_in, di, do), T: (do, do) -> (N, C_out, do, do)."""
    N, C_in, di, _ = x.shape
    C_out, _, _, do = W.shape
    CN = C_in * di          # packed contraction width (128 in the example)
    CO = C_out * do         # packed lane width        (128 in the example)

    # ---- wrapper-side lane-dense packing (layout plumbing, outside the kernel) ----
    eye_ci = jnp.eye(C_in, dtype=x.dtype)
    xbd = jnp.einsum('bimk,ij->bimjk', x, eye_ci).reshape(N, CN, CN)      # block-diag X
    wbig = jnp.transpose(W, (1, 2, 0, 3)).reshape(CN, CO)                 # stacked W
    eye_co = jnp.eye(C_out, dtype=T.dtype)
    tbd = jnp.einsum('rp,oc->orcp', T, eye_co).reshape(CO, CO)            # block-diag T

    # Optional bf16 operands for v6e/v7x MXU (keep f32 accumulate); default f32.
    xbd = xbd.astype(compute_dtype)
    wbig = wbig.astype(compute_dtype)
    tbd = tbd.astype(compute_dtype)

    r = pl.pallas_call(
        _bimap_bn_kernel,
        out_shape=jax.ShapeDtypeStruct((N, CO, CO), jnp.float32),
        grid_spec=pltpu.PrefetchScalarGridSpec(
            num_scalar_prefetch=0,
            grid=(N,),                                       # one step per sample
            in_specs=[
                pl.BlockSpec((1, CN, CN), lambda b: (b, 0, 0)),   # x (fetched once/sample)
                pl.BlockSpec((CN, CO), lambda b: (0, 0)),         # W (fetched once total)
                pl.BlockSpec((CO, CO), lambda b: (0, 0)),         # T (fetched once total)
            ],
            out_specs=pl.BlockSpec((1, CO, CO), lambda b: (b, 0, 0)),
        ),
        compiler_params=pltpu.CompilerParams(
            dimension_semantics=("parallel",)),              # keeps both v7x TCs busy for N>=2
    )(xbd, wbig, tbd)

    # ---- wrapper-side unpack: take the (co, co) diagonal blocks ----
    r5 = r.reshape(N, C_out, do, C_out, do)
    idx = jnp.arange(C_out)
    y = jnp.moveaxis(r5[:, idx, :, idx, :], 0, 1)            # (N, C_out, do, do)
    return y.astype(x.dtype)


# ---------- parameter setup (deterministic, plain JAX glue) ----------

def _sym_mat_pow(M, p):
    w, V = jnp.linalg.eigh(M)
    return (V * (w ** p)) @ V.T


def make_params(C_in, di, do, key):
    # Stiefel-style deterministic init: semi-orthogonal (di x do) per (co, ci) via QR.
    A = jax.random.normal(key, (C_in, C_in, di, do), dtype=jnp.float32)
    Q, _ = jnp.linalg.qr(A)                        # batched reduced QR -> orthonormal columns
    W = Q.astype(jnp.float32)
    # BatchNormSPD params: running_mean = I, weight = I  ->  T = I (computed generally).
    running_mean = jnp.eye(do, dtype=jnp.float32)
    bn_weight = jnp.eye(do, dtype=jnp.float32)
    T = _sym_mat_pow(bn_weight, 0.5) @ _sym_mat_pow(running_mean, -0.5)
    return W, T.astype(jnp.float32)


def make_spd_input(key, N, C_in, n):
    A = jax.random.normal(key, (N, C_in, n, n), dtype=jnp.float32)
    X = jnp.einsum('bcij,bckj->bcik', A, A) / n + 1e-2 * jnp.eye(n, dtype=jnp.float32)
    return X


def reference_forward(x, W, T):
    bim = jnp.einsum('oimp,bimk,oikq->bopq', W, x, W)
    return jnp.einsum('np,bopq,mq->bonm', T, bim, T)


if __name__ == "__main__":
    N, C_in, n = 2, 4, 32            # batch=2, channels=4, SPD dim_in=dim_out=32
    key = jax.random.PRNGKey(0)
    kx, kw = jax.random.split(key)

    x = make_spd_input(kx, N, C_in, n)
    W, T = make_params(C_in, n, n, kw)

    out = bimap_bn_forward(x, W, T)
    out = jax.block_until_ready(out)

    ref = reference_forward(x, W, T)
    assert out.shape == (N, C_in, n, n)
    assert jnp.allclose(out, ref, rtol=1e-3, atol=1e-3), "mismatch vs reference"

    print("KERNEL_OK")
</pallas_src>

<mosaic_0001>
module attributes {stable_mosaic.version = 11 : i64} {
  func.func @_bimap_bn_kernel(%arg0: i32, %arg1: memref<1x128x128xf32, #tpu.memory_space<vmem>>, %arg2: memref<128x128xf32, #tpu.memory_space<vmem>>, %arg3: memref<128x128xf32, #tpu.memory_space<vmem>>, %arg4: memref<1x128x128xf32, #tpu.memory_space<vmem>>) attributes {dimension_semantics = [#tpu.dimension_semantics<parallel>], iteration_bounds = array<i64: 2>, scalar_prefetch = 0 : i64, scratch_operands = 0 : i64, tpu.core_type = #tpu.core_type<tc>, window_params = [{transform_indices = @transform_0, window_bounds = array<i64: 1, 128, 128>}, {pipeline_mode = #tpu.pipeline_mode<synchronous>, transform_indices = @transform_1, window_bounds = array<i64: 128, 128>}, {pipeline_mode = #tpu.pipeline_mode<synchronous>, transform_indices = @transform_2, window_bounds = array<i64: 128, 128>}, {transform_indices = @transform_3, window_bounds = array<i64: 1, 128, 128>}]} {
    %c0 = arith.constant 0 : index
    %c0_0 = arith.constant 0 : index
    %c0_1 = arith.constant 0 : index
    %0 = vector.load %arg1[%c0, %c0_0, %c0_1] : memref<1x128x128xf32, #tpu.memory_space<vmem>>, vector<1x128x128xf32>
    %1 = vector.shape_cast %0 : vector<1x128x128xf32> to vector<128x128xf32>
    %c0_2 = arith.constant 0 : index
    %c0_3 = arith.constant 0 : index
    %2 = vector.load %arg2[%c0_2, %c0_3] : memref<128x128xf32, #tpu.memory_space<vmem>>, vector<128x128xf32>
    %c0_4 = arith.constant 0 : index
    %c0_5 = arith.constant 0 : index
    %3 = vector.load %arg3[%c0_4, %c0_5] : memref<128x128xf32, #tpu.memory_space<vmem>>, vector<128x128xf32>
    %cst = arith.constant dense<0.000000e+00> : vector<128x128xf32>
    %4 = tpu.matmul %2, %1, %cst {dimension_numbers = #tpu.dot_dimension_numbers<[0], [0], [1], [1], [0, 1, 1, 1], [], []>} : vector<128x128xf32>, vector<128x128xf32>, vector<128x128xf32> -> vector<128x128xf32>
    %cst_6 = arith.constant dense<0.000000e+00> : vector<128x128xf32>
    %5 = tpu.matmul %4, %2, %cst_6 {dimension_numbers = #tpu.dot_dimension_numbers<[1], [0], [0], [1], [0, 0, 1, 1], [], []>} : vector<128x128xf32>, vector<128x128xf32>, vector<128x128xf32> -> vector<128x128xf32>
    %cst_7 = arith.constant dense<0.000000e+00> : vector<128x128xf32>
    %6 = tpu.matmul %3, %5, %cst_7 {dimension_numbers = #tpu.dot_dimension_numbers<[1], [0], [0], [1], [0, 0, 1, 1], [], []>} : vector<128x128xf32>, vector<128x128xf32>, vector<128x128xf32> -> vector<128x128xf32>
    %cst_8 = arith.constant dense<0.000000e+00> : vector<128x128xf32>
    %7 = tpu.matmul %6, %3, %cst_8 {dimension_numbers = #tpu.dot_dimension_numbers<[1], [1], [0], [0], [0, 0, 1, 0], [], []>} : vector<128x128xf32>, vector<128x128xf32>, vector<128x128xf32> -> vector<128x128xf32>
    %c0_9 = arith.constant 0 : index
    %c0_10 = arith.constant 0 : index
    %c0_11 = arith.constant 0 : index
    %8 = vector.load %arg4[%c0_9, %c0_10, %c0_11] : memref<1x128x128xf32, #tpu.memory_space<vmem>>, vector<1x128x128xf32>
    %9 = vector.shape_cast %8 : vector<1x128x128xf32> to vector<128x128xf32>
    %10 = vector.shape_cast %7 : vector<128x128xf32> to vector<1x128x128xf32>
    tpu.vector_store %arg4[%c0_9, %c0_10, %c0_11], %10 {strides = array<i32>} : memref<1x128x128xf32, #tpu.memory_space<vmem>>, vector<1x128x128xf32>,
    return
  }
  func.func @transform_0(%arg0: i32) -> (i32, i32, i32) {
    %c0_i32 = arith.constant 0 : i32
    %c0_i32_0 = arith.constant 0 : i32
    %c0_i32_1 = arith.constant 0 : i32
    return %arg0, %c0_i32, %c0_i32_0 : i32, i32, i32
  }
  func.func @transform_1(%arg0: i32) -> (i32, i32) {
    %c0_i32 = arith.constant 0 : i32
    %c0_i32_0 = arith.constant 0 : i32
    %c0_i32_1 = arith.constant 0 : i32
    return %c0_i32, %c0_i32_0 : i32, i32
  }
  func.func @transform_2(%arg0: i32) -> (i32, i32) {
    %c0_i32 = arith.constant 0 : i32
    %c0_i32_0 = arith.constant 0 : i32
    %c0_i32_1 = arith.constant 0 : i32
    return %c0_i32, %c0_i32_0 : i32, i32
  }
  func.func @transform_3(%arg0: i32) -> (i32, i32, i32) {
    %c0_i32 = arith.constant 0 : i32
    %c0_i32_0 = arith.constant 0 : i32
    %c0_i32_1 = arith.constant 0 : i32
    return %arg0, %c0_i32, %c0_i32_0 : i32, i32, i32
  }
}

</mosaic_0001>

<llo_original>
// kernel: tpu_custom_call.1
$region0: #{tpu_custom_call.1}
  #allocation0 [shape = 'u32[]', space=smem, size = 0x4, offset = 0x4, fixed_abs, tag = 'smem constant byte address 0x4 - core index']
  #allocation1 [shape = 'u32[144,128]{1,0:T(1,128)}', space=vmem, size = 0x12000, scoped, tag = 'internal scratch']
  %s0 = inlined_call_operand.hbm [shape: f32[2,128,128], index: 0, kind: input, shape index: {}]
  %s1 = inlined_call_operand.hbm [shape: f32[128,128], index: 1, kind: input, shape index: {}]
  %s2 = inlined_call_operand.hbm [shape: f32[128,128], index: 2, kind: input, shape index: {}]
  %s3 = inlined_call_operand.hbm [shape: f32[2,128,128], index: 3, kind: output, shape index: {}]
  %s4 = sld [smem:[#allocation0]]
  $region57: #{tpu_custom_call.1} parent=0
    _
  %s6 = ssub.s32 1, %s4
  %s7 = scalar_select 0, %s6, %s4
  $region1: #{tpu_custom_call.1} parent=0
    #allocation2 [shape = 'u8[131072]{0}', space=vmem, size = 0x20000, scoped, tag = 'input window, operand 0']
    #allocation3 [shape = 's32[2]{0}', space=sflag, size = 0x8, scoped, tag = 'scoped memory for tpu_custom_call.1']
    #allocation4 [shape = 's32[2]{0}', space=sflag, size = 0x8, scoped, tag = 'scoped memory for tpu_custom_call.1']
    #allocation5 [shape = 'u8[65536]{0}', space=vmem, size = 0x10000, scoped, tag = 'input window, operand 1, single buffered']
    #allocation6 [shape = 's32[1]{0}', space=sflag, size = 0x4, scoped, tag = 'scoped memory for tpu_custom_call.1']
    #allocation7 [shape = 'u8[65536]{0}', space=vmem, size = 0x10000, scoped, tag = 'input window, operand 2, single buffered']
    #allocation8 [shape = 'u8[131072]{0}', space=vmem, size = 0x20000, scoped, tag = 'output window, operand 0']
    %8 = vsyncpa [#allocation3], 0
    %s9 = scalar_lea.sflag [#allocation3], 1
    %10 = vsyncpa %s9, 0
    %11 = vsyncpa [#allocation6], 0
    %12 = vsyncpa [#allocation4], 0
    %s13 = scalar_lea.sflag [#allocation4], 1
    %14 = vsyncpa %s13, 0
    loop: start=0, step=1, limit=4
    $region2: #{tpu_custom_call.1} parent=1 // loop_pre_header
      _
    $region3: #{tpu_custom_call.1} parent=1 // loop_header
      %s16 = sphi 0, %s20
      %p17 = scmp.ge.s32.totalorder %s16, 4
      %s26 = sphi 0, %s28
      %s29 = sphi 0, %s26
      %s30 = sphi 0, %s29
      %s46 = sphi 0, %s30
      %s50 = sphi 0, %s50
      %s52 = sphi 0, %s50
      %s53 = sphi 0, %s52
      %s67 = sphi 0, %s53
      %s71 = sphi 0, %s71
      %s73 = sphi 0, %s71
      %s74 = sphi 0, %s73
      %s88 = sphi 0, %s74
      %s94 = sphi 0, %s96
      %s97 = sphi 0, %s94
      %s98 = sphi 0, %s97
      %s114 = sphi 0, %s98
    $region4: #{tpu_custom_call.1} parent=1 // loop_header_branch
      %19 = sbr.rel (%p17) target = $region8
    $region5: #{tpu_custom_call.1} parent=1 // loop_body
      %s21 = ssub.s32 %s16, 1
      %s22 = ssub.s32 %s16, 2
      %s23 = sadd.s32 %s16, 1
      %s24 = ssub.s32 %s16, %s23
      %p25 = scmp.eq.s32.totalorder %s24, 0
      %s27 = sadd.s32 %s26, 1
      %s28 = scalar_select %p25, %s26, %s27
      %p31 = pneg %p25
      %p32 = scmp.eq.s32.totalorder %s16, 1
      %p33 = por %p31, %p32
      %p34 = scmp.ne.s32.totalorder %s26, %s29
      %p35 = scmp.eq.s32.totalorder %s16, 0
      %p36 = por %p34, %p35
      %p37 = scmp.ne.s32.totalorder %s26, %s29
      %p38 = scmp.eq.s32.totalorder %s21, 1
      %p39 = por %p37, %p38
      %p40 = scmp.ne.s32.totalorder %s29, %s30
      %p41 = scmp.eq.s32.totalorder %s21, 0
      %p42 = por %p40, %p41
      %p43 = scmp.ne.s32.totalorder %s29, %s30
      %p44 = scmp.eq.s32.totalorder %s22, 1
      %p45 = por %p43, %p44
      %p47 = scmp.ne.s32.totalorder %s30, %s46
      %p48 = scmp.eq.s32.totalorder %s22, 0
      %p49 = por %p47, %p48
      %s51 = sadd.s32 %s50, 1
      %p54 = scmp.eq.s32.totalorder %s16, 1
      %p55 = scmp.ne.s32.totalorder %s50, %s52
      %p56 = scmp.eq.s32.totalorder %s16, 0
      %p57 = por %p55, %p56
      %p58 = scmp.ne.s32.totalorder %s50, %s52
      %p59 = scmp.eq.s32.totalorder %s21, 1
      %p60 = por %p58, %p59
      %p61 = scmp.ne.s32.totalorder %s52, %s53
      %p62 = scmp.eq.s32.totalorder %s21, 0
      %p63 = por %p61, %p62
      %p64 = scmp.ne.s32.totalorder %s52, %s53
      %p65 = scmp.eq.s32.totalorder %s22, 1
      %p66 = por %p64, %p65
      %p68 = scmp.ne.s32.totalorder %s53, %s67
      %p69 = scmp.eq.s32.totalorder %s22, 0
      %p70 = por %p68, %p69
      %s72 = sadd.s32 %s71, 1
      %p75 = scmp.eq.s32.totalorder %s16, 1
      %p76 = scmp.ne.s32.totalorder %s71, %s73
      %p77 = scmp.eq.s32.totalorder %s16, 0
      %p78 = por %p76, %p77
      %p79 = scmp.ne.s32.totalorder %s71, %s73
      %p80 = scmp.eq.s32.totalorder %s21, 1
      %p81 = por %p79, %p80
      %p82 = scmp.ne.s32.totalorder %s73, %s74
      %p83 = scmp.eq.s32.totalorder %s21, 0
      %p84 = por %p82, %p83
      %p85 = scmp.ne.s32.totalorder %s73, %s74
      %p86 = scmp.eq.s32.totalorder %s22, 1
      %p87 = por %p85, %p86
      %p89 = scmp.ne.s32.totalorder %s74, %s88
      %p90 = scmp.eq.s32.totalorder %s22, 0
      %p91 = por %p89, %p90
      %s92 = ssub.s32 %s16, %s23
      %p93 = scmp.eq.s32.totalorder %s92, 0
      %s95 = sadd.s32 %s94, 1
      %s96 = scalar_select %p93, %s94, %s95
      %p99 = pneg %p93
      %p100 = scmp.eq.s32.totalorder %s16, 1
      %p101 = por %p99, %p100
      %p102 = scmp.ne.s32.totalorder %s94, %s97
      %p103 = scmp.eq.s32.totalorder %s16, 0
      %p104 = por %p102, %p103
      %p105 = scmp.ne.s32.totalorder %s94, %s97
      %p106 = scmp.eq.s32.totalorder %s21, 1
      %p107 = por %p105, %p106
      %p108 = scmp.ne.s32.totalorder %s97, %s98
      %p109 = scmp.eq.s32.totalorder %s21, 0
      %p110 = por %p108, %p109
      %p111 = scmp.ne.s32.totalorder %s97, %s98
      %p112 = scmp.eq.s32.totalorder %s22, 1
      %p113 = por %p111, %p112
      %p115 = scmp.ne.s32.totalorder %s98, %s114
      %p116 = scmp.eq.s32.totalorder %s22, 0
      %p117 = por %p115, %p116
      %p118 = scmp.le.s32.totalorder 1, %s16
      %p119 = scmp.lt.s32.totalorder %s16, 3
      %p120 = pnand %p118, %p119
      %p121 = pneg %p120
      // Predicated region
      $region9: #{tpu_custom_call.1} parent=5 // pred_check
        _
      $region10: #{tpu_custom_call.1} parent=5 // pred_check_branch
        %123 = sbr.rel (%p120) target = $region12
      $region11: #{tpu_custom_call.1} parent=5 // pred_region
        %s124 = ssub.s32 %s16, 1
        // Predicated region
        $region13: #{tpu_custom_call.1} parent=11 // pred_check
          %p125 = pneg %p63
        $region14: #{tpu_custom_call.1} parent=11 // pred_check_branch
          %127 = sbr.rel (%p125) target = $region16
        $region15: #{tpu_custom_call.1} parent=11 // pred_region
          %s129 = ssub.s32 2048, 2048
          %130 = vsyncadd [#allocation6], %s129
          %s131 = sshll.u32 [#allocation5], 4
          %s132 = int_to_ptr.vmem [resolvable:$true] %s131
          %137 = dma.hbm_to_vmem [thread:$0]  %s1, 2048, %s132, [#allocation6], 128, 128, 8
        $region16: #{tpu_custom_call.1} parent=11 // pred_fallthru
          _
        // Predicated region
        $region17: #{tpu_custom_call.1} parent=11 // pred_check
          %p138 = pneg %p84
        $region18: #{tpu_custom_call.1} parent=11 // pred_check_branch
          %140 = sbr.rel (%p138) target = $region20
        $region19: #{tpu_custom_call.1} parent=11 // pred_region
          %s142 = ssub.s32 2048, 2048
          %143 = vsyncadd [#allocation6], %s142
          %s144 = sshll.u32 [#allocation7], 4
          %s145 = int_to_ptr.vmem [resolvable:$true] %s144
          %150 = dma.hbm_to_vmem [thread:$0]  %s2, 2048, %s145, [#allocation6], 128, 128, 8
        $region20: #{tpu_custom_call.1} parent=11 // pred_fallthru
          _
      $region12: #{tpu_custom_call.1} parent=5 // pred_fallthru
        _
      %p151 = scmp.lt.s32.totalorder %s16, 2
      // Predicated region
      $region21: #{tpu_custom_call.1} parent=5 // pred_check
        %p152 = pneg %p151
      $region22: #{tpu_custom_call.1} parent=5 // pred_check_branch
        %154 = sbr.rel (%p152) target = $region24
      $region23: #{tpu_custom_call.1} parent=5 // pred_region
        // Predicated region
        $region25: #{tpu_custom_call.1} parent=23 // pred_check
          %p155 = pneg %p36
        $region26: #{tpu_custom_call.1} parent=23 // pred_check_branch
          %157 = sbr.rel (%p155) target = $region28
        $region27: #{tpu_custom_call.1} parent=23 // pred_region
          %s158 = sand.u32 %s26, 1
          %s159 = scalar_lea.sflag [#allocation3], %s158
          %s160 = sand.u32 %s26, 1
          %s161 = smul.addr %s160, 128
          %s162 = scalar_lea.vmem [#allocation2], %s161
          %s164 = ssub.s32 2048, 2048
          %165 = vsyncadd %s159, %s164
          %s166 = smul.addr %s16, 16
          %s167 = smul.addr %s166, 128
          %s168 = scalar_lea.hbm %s0, %s167
          %s169 = sshll.u32 %s162, 4
          %s170 = int_to_ptr.vmem [resolvable:$true] %s169
          %175 = dma.hbm_to_vmem [thread:$0]  %s168, 2048, %s170, %s159, 128, 128, 8
        $region28: #{tpu_custom_call.1} parent=23 // pred_fallthru
          _
      $region24: #{tpu_custom_call.1} parent=5 // pred_fallthru
        _
      %p176 = scmp.le.s32.totalorder 1, %s16
      %p177 = scmp.lt.s32.totalorder %s16, 3
      %p178 = pnand %p176, %p177
      %p179 = pneg %p178
      // Predicated region
      $region29: #{tpu_custom_call.1} parent=5 // pred_check
        _
      $region30: #{tpu_custom_call.1} parent=5 // pred_check_branch
        %181 = sbr.rel (%p178) target = $region32
      $region31: #{tpu_custom_call.1} parent=5 // pred_region
        %s182 = ssub.s32 %s16, 1
        %s183 = sand.u32 %s29, 1
        %s184 = scalar_lea.sflag [#allocation3], %s183
        %s185 = sand.u32 %s29, 1
        %s186 = smul.addr %s185, 128
        %s187 = scalar_lea.vmem [#allocation2], %s186
        // Predicated region
        $region33: #{tpu_custom_call.1} parent=31 // pred_check
          %p188 = pneg %p42
        $region34: #{tpu_custom_call.1} parent=31 // pred_check_branch
          %190 = sbr.rel (%p188) target = $region36
        $region35: #{tpu_custom_call.1} parent=31 // pred_region
          %191 = dma.done %s184, 2048
        $region36: #{tpu_custom_call.1} parent=31 // pred_fallthru
          _
        // Predicated region
        $region37: #{tpu_custom_call.1} parent=31 // pred_check
          %p192 = pneg %p63
        $region38: #{tpu_custom_call.1} parent=31 // pred_check_branch
          %194 = sbr.rel (%p192) target = $region40
        $region39: #{tpu_custom_call.1} parent=31 // pred_region
          %195 = dma.done [#allocation6], 2048
        $region40: #{tpu_custom_call.1} parent=31 // pred_fallthru
          _
        // Predicated region
        $region41: #{tpu_custom_call.1} parent=31 // pred_check
          %p196 = pneg %p84
        $region42: #{tpu_custom_call.1} parent=31 // pred_check_branch
          %198 = sbr.rel (%p196) target = $region44
        $region43: #{tpu_custom_call.1} parent=31 // pred_region
          %199 = dma.done [#allocation6], 2048
        $region44: #{tpu_custom_call.1} parent=31 // pred_fallthru
          _
        %s200 = sand.u32 %s29, 1
        %s201 = scalar_lea.sflag [#allocation3], %s200
        %s202 = sand.u32 %s29, 1
        %s203 = smul.addr %s202, 128
        %s204 = scalar_lea.vmem [#allocation2], %s203
        %p205 = pneg %p42
        %p206 = pneg %p39
        %p207 = pneg %p63
        %p208 = pneg %p60
        %p209 = pneg %p84
        %p210 = pneg %p81
        %p211 = pneg %p110
        %p212 = pneg %p107
        %s213 = sand.u32 %s97, 1
        %s214 = scalar_lea.sflag [#allocation4], %s213
        %s215 = sand.u32 %s97, 1
        %s216 = smul.addr %s215, 128
        %s217 = scalar_lea.vmem [#allocation8], %s216
        %v218 = vld [vmem:[%s187] sm:$0xff]
        %v219 = vld [vmem:[%s187 + $0x8] sm:$0xff]
        %v220 = vld [vmem:[%s187 + $0x10] sm:$0xff]
        %v221 = vld [vmem:[%s187 + $0x18] sm:$0xff]
        %v222 = vld [vmem:[%s187 + $0x20] sm:$0xff]
        %v223 = vld [vmem:[%s187 + $0x28] sm:$0xff]
        %v224 = vld [vmem:[%s187 + $0x30] sm:$0xff]
        %v225 = vld [vmem:[%s187 + $0x38] sm:$0xff]
        %v226 = vld [vmem:[%s187 + $0x40] sm:$0xff]
        %v227 = vld [vmem:[%s187 + $0x48] sm:$0xff]
        %v228 = vld [vmem:[%s187 + $0x50] sm:$0xff]
        %v229 = vld [vmem:[%s187 + $0x58] sm:$0xff]
        %v230 = vld [vmem:[%s187 + $0x60] sm:$0xff]
        %v231 = vld [vmem:[%s187 + $0x68] sm:$0xff]
        %v232 = vld [vmem:[%s187 + $0x70] sm:$0xff]
        %v233 = vld [vmem:[%s187 + $0x78] sm:$0xff]
        %v234 = vld [vmem:[#allocation5] sm:$0xff]
        %v235 = vld [vmem:[#allocation5 + $0x8] sm:$0xff]
        %v236 = vld [vmem:[#allocation5 + $0x10] sm:$0xff]
        %v237 = vld [vmem:[#allocation5 + $0x18] sm:$0xff]
        %v238 = vld [vmem:[#allocation5 + $0x20] sm:$0xff]
        %v239 = vld [vmem:[#allocation5 + $0x28] sm:$0xff]
        %v240 = vld [vmem:[#allocation5 + $0x30] sm:$0xff]
        %v241 = vld [vmem:[#allocation5 + $0x38] sm:$0xff]
        %v242 = vld [vmem:[#allocation5 + $0x40] sm:$0xff]
        %v243 = vld [vmem:[#allocation5 + $0x48] sm:$0xff]
        %v244 = vld [vmem:[#allocation5 + $0x50] sm:$0xff]
        %v245 = vld [vmem:[#allocation5 + $0x58] sm:$0xff]
        %v246 = vld [vmem:[#allocation5 + $0x60] sm:$0xff]
        %v247 = vld [vmem:[#allocation5 + $0x68] sm:$0xff]
        %v248 = vld [vmem:[#allocation5 + $0x70] sm:$0xff]
        %v249 = vld [vmem:[#allocation5 + $0x78] sm:$0xff]
        %v250 = vld [vmem:[#allocation7] sm:$0xff]
        %v251 = vld [vmem:[#allocation7 + $0x8] sm:$0xff]
        %v252 = vld [vmem:[#allocation7 + $0x10] sm:$0xff]
        %v253 = vld [vmem:[#allocation7 + $0x18] sm:$0xff]
        %v254 = vld [vmem:[#allocation7 + $0x20] sm:$0xff]
        %v255 = vld [vmem:[#allocation7 + $0x28] sm:$0xff]
        %v256 = vld [vmem:[#allocation7 + $0x30] sm:$0xff]
        %v257 = vld [vmem:[#allocation7 + $0x38] sm:$0xff]
        %v258 = vld [vmem:[#allocation7 + $0x40] sm:$0xff]
        %v259 = vld [vmem:[#allocation7 + $0x48] sm:$0xff]
        %v260 = vld [vmem:[#allocation7 + $0x50] sm:$0xff]
        %v261 = vld [vmem:[#allocation7 + $0x58] sm:$0xff]
        %v262 = vld [vmem:[#allocation7 + $0x60] sm:$0xff]
        %v263 = vld [vmem:[#allocation7 + $0x68] sm:$0xff]
        %v264 = vld [vmem:[#allocation7 + $0x70] sm:$0xff]
        %v265 = vld [vmem:[#allocation7 + $0x78] sm:$0xff]
        %266 = vxpose.xlu0.b32.start [1/16] %v234, 128
        %267 = vxpose.xlu0.b32.cont [2/16] %v235, 128
        %268 = vxpose.xlu0.b32.cont [3/16] %v236, 128
        %269 = vxpose.xlu0.b32.cont [4/16] %v237, 128
        %270 = vxpose.xlu0.b32.cont [5/16] %v238, 128
        %271 = vxpose.xlu0.b32.cont [6/16] %v239, 128
        %272 = vxpose.xlu0.b32.cont [7/16] %v240, 128
        %273 = vxpose.xlu0.b32.cont [8/16] %v241, 128
        %274 = vxpose.xlu0.b32.cont [9/16] %v242, 128
        %275 = vxpose.xlu0.b32.cont [10/16] %v243, 128
        %276 = vxpose.xlu0.b32.cont [11/16] %v244, 128
        %277 = vxpose.xlu0.b32.cont [12/16] %v245, 128
        %278 = vxpose.xlu0.b32.cont [13/16] %v246, 128
        %279 = vxpose.xlu0.b32.cont [14/16] %v247, 128
        %280 = vxpose.xlu0.b32.cont [15/16] %v248, 128
        %281 = vxpose.xlu0.b32.end [16/16] %v249, 128
        %v282 = vpop.trf.xlu0
        %v283 = vpop.trf.xlu0
        %v284 = vpop.trf.xlu0
        %v285 = vpop.trf.xlu0
        %v286 = vpop.trf.xlu0
        %v287 = vpop.trf.xlu0
        %v288 = vpop.trf.xlu0
        %v289 = vpop.trf.xlu0
        %v290 = vpop.trf.xlu0
        %v291 = vpop.trf.xlu0
        %v292 = vpop.trf.xlu0
        %v293 = vpop.trf.xlu0
        %v294 = vpop.trf.xlu0
        %v295 = vpop.trf.xlu0
        %v296 = vpop.trf.xlu0
        %v297 = vpop.trf.xlu0
        %298 = vmatprep.subr.mxu0 0.0
        %299 = vmatpush1.msra.mxu0 %v218
        %300 = vmatprep.subr.mxu0 0.0
        %301 = vmatpush1.msra.mxu0 %v219
        %302 = vmatprep.subr.mxu0 0.0
        %303 = vmatpush1.msra.mxu0 %v220
        %304 = vmatprep.subr.mxu0 0.0
        %305 = vmatpush1.msra.mxu0 %v221
        %306 = vmatprep.subr.mxu0 0.0
        %307 = vmatpush1.msra.mxu0 %v222
        %308 = vmatprep.subr.mxu0 0.0
        %309 = vmatpush1.msra.mxu0 %v223
        %310 = vmatprep.subr.mxu0 0.0
        %311 = vmatpush1.msra.mxu0 %v224
        %312 = vmatprep.subr.mxu0 0.0
        %313 = vmatpush1.msra.mxu0 %v225
        %314 = vmatprep.subr.mxu0 0.0
        %315 = vmatpush1.msra.mxu0 %v226
        %316 = vmatprep.subr.mxu0 0.0
        %317 = vmatpush1.msra.mxu0 %v227
        %318 = vmatprep.subr.mxu0 0.0
        %319 = vmatpush1.msra.mxu0 %v228
        %320 = vmatprep.subr.mxu0 0.0
        %321 = vmatpush1.msra.mxu0 %v229
        %322 = vmatprep.subr.mxu0 0.0
        %323 = vmatpush1.msra.mxu0 %v230
        %324 = vmatprep.subr.mxu0 0.0
        %325 = vmatpush1.msra.mxu0 %v231
        %326 = vmatprep.subr.mxu0 0.0
        %327 = vmatpush1.msra.mxu0 %v232
        %328 = vmatprep.subr.mxu0 0.0
        %329 = vmatpush1.msra.mxu0 %v233
        %330 = vmatprep.subr.mxu0 0.0
        %331 = vmatpush1.msra.mxu0 0.0
        %332 = vmatprep.subr.mxu0 0.0
        %333 = vmatpush1.msra.mxu0 0.0
        %334 = vmatprep.subr.mxu0 0.0
        %335 = vmatpush1.msra.mxu0 0.0
        %336 = vmatprep.subr.mxu0 0.0
        %337 = vmatpush1.msra.mxu0 0.0
        %338 = vmatprep.subr.mxu0 0.0
        %339 = vmatpush1.msra.mxu0 0.0
        %340 = vmatprep.subr.mxu0 0.0
        %341 = vmatpush1.msra.mxu0 0.0
        %342 = vmatprep.subr.mxu0 0.0
        %343 = vmatpush1.msra.mxu0 0.0
        %344 = vmatprep.subr.mxu0 0.0
        %345 = vmatpush1.msra.mxu0 0.0
        %346 = vmatprep.subr.mxu0 0.0
        %347 = vmatpush1.msra.mxu0 0.0
        %348 = vmatprep.subr.mxu0 0.0
        %349 = vmatpush1.msra.mxu0 0.0
        %350 = vmatprep.subr.mxu0 0.0
        %351 = vmatpush1.msra.mxu0 0.0
        %352 = vmatprep.subr.mxu0 0.0
        %353 = vmatpush1.msra.mxu0 0.0
        %354 = vmatprep.subr.mxu0 0.0
        %355 = vmatpush1.msra.mxu0 0.0
        %356 = vmatprep.subr.mxu0 0.0
        %357 = vmatpush1.msra.mxu0 0.0
        %358 = vmatprep.subr.mxu0 0.0
        %359 = vmatpush1.msra.mxu0 0.0
        %360 = vmatprep.subr.mxu0 0.0
        %361 = vmatpush1.msra.mxu0 0.0
        %362 = vmatprep.mubr.f32.mxu0 0.0
        %363 = vmatmul.mubr.f32.gmra.mrb[0].mxu0 %v282
        %v364 = vpop.f32.mrb[0].mxu0
        %v365 = vadd.f32 0.0, %v364
        %v366 = vpop.f32.mrb[0].mxu0
        %367 = vmatprep.mubr.f32.mxu0 0.0
        %368 = vmatmul.mubr.f32.gmra.mrb[0].mxu0 %v283
        %v369 = vpop.f32.mrb[0].mxu0
        %v370 = vadd.f32 0.0, %v369
        %v371 = vpop.f32.mrb[0].mxu0
        %372 = vmatprep.mubr.f32.mxu0 0.0
        %373 = vmatmul.mubr.f32.gmra.mrb[0].mxu0 %v284
        %v374 = vpop.f32.mrb[0].mxu0
        %v375 = vadd.f32 0.0, %v374
        %v376 = vpop.f32.mrb[0].mxu0
        %377 = vmatprep.mubr.f32.mxu0 0.0
        %378 = vmatmul.mubr.f32.gmra.mrb[0].mxu0 %v285
        %v379 = vpop.f32.mrb[0].mxu0
        %v380 = vadd.f32 0.0, %v379
        %v381 = vpop.f32.mrb[0].mxu0
        %382 = vmatprep.mubr.f32.mxu0 0.0
        %383 = vmatmul.mubr.f32.gmra.mrb[0].mxu0 %v286
        %v384 = vpop.f32.mrb[0].mxu0
        %v385 = vadd.f32 0.0, %v384
        %v386 = vpop.f32.mrb[0].mxu0
        %387 = vmatprep.mubr.f32.mxu0 0.0
        %388 = vmatmul.mubr.f32.gmra.mrb[0].mxu0 %v287
        %v389 = vpop.f32.mrb[0].mxu0
        %v390 = vadd.f32 0.0, %v389
        %v391 = vpop.f32.mrb[0].mxu0
        %392 = vmatprep.mubr.f32.mxu0 0.0
        %393 = vmatmul.mubr.f32.gmra.mrb[0].mxu0 %v288
        %v394 = vpop.f32.mrb[0].mxu0
        %v395 = vadd.f32 0.0, %v394
        %v396 = vpop.f32.mrb[0].mxu0
        %397 = vmatprep.mubr.f32.mxu0 0.0
        %398 = vmatmul.mubr.f32.gmra.mrb[0].mxu0 %v289
        %v399 = vpop.f32.mrb[0].mxu0
        %v400 = vadd.f32 0.0, %v399
        %v401 = vpop.f32.mrb[0].mxu0
        %402 = vmatprep.mubr.f32.mxu0 0.0
        %403 = vmatmul.mubr.f32.gmra.mrb[0].mxu0 %v290
        %v404 = vpop.f32.mrb[0].mxu0
        %v405 = vadd.f32 0.0, %v404
        %v406 = vpop.f32.mrb[0].mxu0
        %407 = vmatprep.mubr.f32.mxu0 0.0
        %408 = vmatmul.mubr.f32.gmra.mrb[0].mxu0 %v291
        %v409 = vpop.f32.mrb[0].mxu0
        %v410 = vadd.f32 0.0, %v409
        %v411 = vpop.f32.mrb[0].mxu0
        %412 = vmatprep.mubr.f32.mxu0 0.0
        %413 = vmatmul.mubr.f32.gmra.mrb[0].mxu0 %v292
        %v414 = vpop.f32.mrb[0].mxu0
        %v415 = vadd.f32 0.0, %v414
        %v416 = vpop.f32.mrb[0].mxu0
        %417 = vmatprep.mubr.f32.mxu0 0.0
        %418 = vmatmul.mubr.f32.gmra.mrb[0].mxu0 %v293
        %v419 = vpop.f32.mrb[0].mxu0
        %v420 = vadd.f32 0.0, %v419
        %v421 = vpop.f32.mrb[0].mxu0
        %422 = vmatprep.mubr.f32.mxu0 0.0
        %423 = vmatmul.mubr.f32.gmra.mrb[0].mxu0 %v294
        %v424 = vpop.f32.mrb[0].mxu0
        %v425 = vadd.f32 0.0, %v424
        %v426 = vpop.f32.mrb[0].mxu0
        %427 = vmatprep.mubr.f32.mxu0 0.0
        %428 = vmatmul.mubr.f32.gmra.mrb[0].mxu0 %v295
        %v429 = vpop.f32.mrb[0].mxu0
        %v430 = vadd.f32 0.0, %v429
        %v431 = vpop.f32.mrb[0].mxu0
        %432 = vmatprep.mubr.f32.mxu0 0.0
        %433 = vmatmul.mubr.f32.gmra.mrb[0].mxu0 %v296
        %v434 = vpop.f32.mrb[0].mxu0
        %v435 = vadd.f32 0.0, %v434
        %v436 = vpop.f32.mrb[0].mxu0
        %437 = vmatprep.mubr.f32.mxu0 0.0
        %438 = vmatmul.mubr.f32.gmra.mrb[0].mxu0 %v297
        %v439 = vpop.f32.mrb[0].mxu0
        %v440 = vadd.f32 0.0, %v439
        %v441 = vpop.f32.mrb[0].mxu0
        %442 = vdwg.mxu0
        %443 = vmatprep.subr.mxu0 0.0
        %444 = vmatpush1.msra.mxu0 %v234
        %445 = vmatprep.subr.mxu0 0.0
        %446 = vmatpush1.msra.mxu0 %v235
        %447 = vmatprep.subr.mxu0 0.0
        %448 = vmatpush1.msra.mxu0 %v236
        %449 = vmatprep.subr.mxu0 0.0
        %450 = vmatpush1.msra.mxu0 %v237
        %451 = vmatprep.subr.mxu0 0.0
        %452 = vmatpush1.msra.mxu0 %v238
        %453 = vmatprep.subr.mxu0 0.0
        %454 = vmatpush1.msra.mxu0 %v239
        %455 = vmatprep.subr.mxu0 0.0
        %456 = vmatpush1.msra.mxu0 %v240
        %457 = vmatprep.subr.mxu0 0.0
        %458 = vmatpush1.msra.mxu0 %v241
        %459 = vmatprep.subr.mxu0 0.0
        %460 = vmatpush1.msra.mxu0 %v242
        %461 = vmatprep.subr.mxu0 0.0
        %462 = vmatpush1.msra.mxu0 %v243
        %463 = vmatprep.subr.mxu0 0.0
        %464 = vmatpush1.msra.mxu0 %v244
        %465 = vmatprep.subr.mxu0 0.0
        %466 = vmatpush1.msra.mxu0 %v245
        %467 = vmatprep.subr.mxu0 0.0
        %468 = vmatpush1.msra.mxu0 %v246
        %469 = vmatprep.subr.mxu0 0.0
        %470 = vmatpush1.msra.mxu0 %v247
        %471 = vmatprep.subr.mxu0 0.0
        %472 = vmatpush1.msra.mxu0 %v248
        %473 = vmatprep.subr.mxu0 0.0
        %474 = vmatpush1.msra.mxu0 %v249
        %475 = vmatprep.subr.mxu0 0.0
        %476 = vmatpush1.msra.mxu0 0.0
        %477 = vmatprep.subr.mxu0 0.0
        %478 = vmatpush1.msra.mxu0 0.0
        %479 = vmatprep.subr.mxu0 0.0
        %480 = vmatpush1.msra.mxu0 0.0
        %481 = vmatprep.subr.mxu0 0.0
        %482 = vmatpush1.msra.mxu0 0.0
        %483 = vmatprep.subr.mxu0 0.0
        %484 = vmatpush1.msra.mxu0 0.0
        %485 = vmatprep.subr.mxu0 0.0
        %486 = vmatpush1.msra.mxu0 0.0
        %487 = vmatprep.subr.mxu0 0.0
        %488 = vmatpush1.msra.mxu0 0.0
        %489 = vmatprep.subr.mxu0 0.0
        %490 = vmatpush1.msra.mxu0 0.0
        %491 = vmatprep.subr.mxu0 0.0
        %492 = vmatpush1.msra.mxu0 0.0
        %493 = vmatprep.subr.mxu0 0.0
        %494 = vmatpush1.msra.mxu0 0.0
        %495 = vmatprep.subr.mxu0 0.0
        %496 = vmatpush1.msra.mxu0 0.0
        %497 = vmatprep.subr.mxu0 0.0
        %498 = vmatpush1.msra.mxu0 0.0
        %499 = vmatprep.subr.mxu0 0.0
        %500 = vmatpush1.msra.mxu0 0.0
        %501 = vmatprep.subr.mxu0 0.0
        %502 = vmatpush1.msra.mxu0 0.0
        %503 = vmatprep.subr.mxu0 0.0
        %504 = vmatpush1.msra.mxu0 0.0
        %505 = vmatprep.subr.mxu0 0.0
        %506 = vmatpush1.msra.mxu0 0.0
        %507 = vmatprep.mubr.f32.mxu0 0.0
        %508 = vmatmul.mubr.f32.gmra.mrb[0].mxu0 %v365
        %v509 = vpop.f32.mrb[0].mxu0
        %v510 = vadd.f32 0.0, %v509
        %v511 = vpop.f32.mrb[0].mxu0
        %512 = vmatprep.mubr.f32.mxu0 0.0
        %513 = vmatmul.mubr.f32.gmra.mrb[0].mxu0 %v370
        %v514 = vpop.f32.mrb[0].mxu0
        %v515 = vadd.f32 0.0, %v514
        %v516 = vpop.f32.mrb[0].mxu0
        %517 = vmatprep.mubr.f32.mxu0 0.0
        %518 = vmatmul.mubr.f32.gmra.mrb[0].mxu0 %v375
        %v519 = vpop.f32.mrb[0].mxu0
        %v520 = vadd.f32 0.0, %v519
        %v521 = vpop.f32.mrb[0].mxu0
        %522 = vmatprep.mubr.f32.mxu0 0.0
        %523 = vmatmul.mubr.f32.gmra.mrb[0].mxu0 %v380
        %v524 = vpop.f32.mrb[0].mxu0
        %v525 = vadd.f32 0.0, %v524
        %v526 = vpop.f32.mrb[0].mxu0
        %527 = vmatprep.mubr.f32.mxu0 0.0
        %528 = vmatmul.mubr.f32.gmra.mrb[0].mxu0 %v385
        %v529 = vpop.f32.mrb[0].mxu0
        %v530 = vadd.f32 0.0, %v529
        %v531 = vpop.f32.mrb[0].mxu0
        %532 = vmatprep.mubr.f32.mxu0 0.0
        %533 = vmatmul.mubr.f32.gmra.mrb[0].mxu0 %v390
        %v534 = vpop.f32.mrb[0].mxu0
        %v535 = vadd.f32 0.0, %v534
        %v536 = vpop.f32.mrb[0].mxu0
        %537 = vmatprep.mubr.f32.mxu0 0.0
        %538 = vmatmul.mubr.f32.gmra.mrb[0].mxu0 %v395
        %v539 = vpop.f32.mrb[0].mxu0
        %v540 = vadd.f32 0.0, %v539
        %v541 = vpop.f32.mrb[0].mxu0
        %542 = vmatprep.mubr.f32.mxu0 0.0
        %543 = vmatmul.mubr.f32.gmra.mrb[0].mxu0 %v400
        %v544 = vpop.f32.mrb[0].mxu0
        %v545 = vadd.f32 0.0, %v544
        %v546 = vpop.f32.mrb[0].mxu0
        %547 = vmatprep.mubr.f32.mxu0 0.0
        %548 = vmatmul.mubr.f32.gmra.mrb[0].mxu0 %v405
        %v549 = vpop.f32.mrb[0].mxu0
        %v550 = vadd.f32 0.0, %v549
        %v551 = vpop.f32.mrb[0].mxu0
        %552 = vmatprep.mubr.f32.mxu0 0.0
        %553 = vmatmul.mubr.f32.gmra.mrb[0].mxu0 %v410
        %v554 = vpop.f32.mrb[0].mxu0
        %v555 = vadd.f32 0.0, %v554
        %v556 = vpop.f32.mrb[0].mxu0
        %557 = vmatprep.mubr.f32.mxu0 0.0
        %558 = vmatmul.mubr.f32.gmra.mrb[0].mxu0 %v415
        %v559 = vpop.f32.mrb[0].mxu0
        %v560 = vadd.f32 0.0, %v559
        %v561 = vpop.f32.mrb[0].mxu0
        %562 = vmatprep.mubr.f32.mxu0 0.0
        %563 = vmatmul.mubr.f32.gmra.mrb[0].mxu0 %v420
        %v564 = vpop.f32.mrb[0].mxu0
        %v565 = vadd.f32 0.0, %v564
        %v566 = vpop.f32.mrb[0].mxu0
        %567 = vmatprep.mubr.f32.mxu0 0.0
        %568 = vmatmul.mubr.f32.gmra.mrb[0].mxu0 %v425
        %v569 = vpop.f32.mrb[0].mxu0
        %v570 = vadd.f32 0.0, %v569
        %v571 = vpop.f32.mrb[0].mxu0
        %572 = vmatprep.mubr.f32.mxu0 0.0
        %573 = vmatmul.mubr.f32.gmra.mrb[0].mxu0 %v430
        %v574 = vpop.f32.mrb[0].mxu0
        %v575 = vadd.f32 0.0, %v574
        %v576 = vpop.f32.mrb[0].mxu0
        %577 = vmatprep.mubr.f32.mxu0 0.0
        %578 = vmatmul.mubr.f32.gmra.mrb[0].mxu0 %v435
        %v579 = vpop.f32.mrb[0].mxu0
        %v580 = vadd.f32 0.0, %v579
        %v581 = vpop.f32.mrb[0].mxu0
        %582 = vmatprep.mubr.f32.mxu0 0.0
        %583 = vmatmul.mubr.f32.gmra.mrb[0].mxu0 %v440
        %v584 = vpop.f32.mrb[0].mxu0
        %v585 = vadd.f32 0.0, %v584
        %v586 = vpop.f32.mrb[0].mxu0
        %587 = vdwg.mxu0
        %588 = vmatprep.subr.mxu0 0.0
        %589 = vmatpush1.msra.mxu0 %v510
        %590 = vmatprep.subr.mxu0 0.0
        %591 = vmatpush1.msra.mxu0 %v515
        %592 = vmatprep.subr.mxu0 0.0
        %593 = vmatpush1.msra.mxu0 %v520
        %594 = vmatprep.subr.mxu0 0.0
        %595 = vmatpush1.msra.mxu0 %v525
        %596 = vmatprep.subr.mxu0 0.0
        %597 = vmatpush1.msra.mxu0 %v530
        %598 = vmatprep.subr.mxu0 0.0
        %599 = vmatpush1.msra.mxu0 %v535
        %600 = vmatprep.subr.mxu0 0.0
        %601 = vmatpush1.msra.mxu0 %v540
        %602 = vmatprep.subr.mxu0 0.0
        %603 = vmatpush1.msra.mxu0 %v545
        %604 = vmatprep.subr.mxu0 0.0
        %605 = vmatpush1.msra.mxu0 %v550
        %606 = vmatprep.subr.mxu0 0.0
        %607 = vmatpush1.msra.mxu0 %v555
        %608 = vmatprep.subr.mxu0 0.0
        %609 = vmatpush1.msra.mxu0 %v560
        %610 = vmatprep.subr.mxu0 0.0
        %611 = vmatpush1.msra.mxu0 %v565
        %612 = vmatprep.subr.mxu0 0.0
        %613 = vmatpush1.msra.mxu0 %v570
        %614 = vmatprep.subr.mxu0 0.0
        %615 = vmatpush1.msra.mxu0 %v575
        %616 = vmatprep.subr.mxu0 0.0
        %617 = vmatpush1.msra.mxu0 %v580
        %618 = vmatprep.subr.mxu0 0.0
        %619 = vmatpush1.msra.mxu0 %v585
        %620 = vmatprep.subr.mxu0 0.0
        %621 = vmatpush1.msra.mxu0 0.0
        %622 = vmatprep.subr.mxu0 0.0
        %623 = vmatpush1.msra.mxu0 0.0
        %624 = vmatprep.subr.mxu0 0.0
        %625 = vmatpush1.msra.mxu0 0.0
        %626 = vmatprep.subr.mxu0 0.0
        %627 = vmatpush1.msra.mxu0 0.0
        %628 = vmatprep.subr.mxu0 0.0
        %629 = vmatpush1.msra.mxu0 0.0
        %630 = vmatprep.subr.mxu0 0.0
        %631 = vmatpush1.msra.mxu0 0.0
        %632 = vmatprep.subr.mxu0 0.0
        %633 = vmatpush1.msra.mxu0 0.0
        %634 = vmatprep.subr.mxu0 0.0
        %635 = vmatpush1.msra.mxu0 0.0
        %636 = vmatprep.subr.mxu0 0.0
        %637 = vmatpush1.msra.mxu0 0.0
        %638 = vmatprep.subr.mxu0 0.0
        %639 = vmatpush1.msra.mxu0 0.0
        %640 = vmatprep.subr.mxu0 0.0
        %641 = vmatpush1.msra.mxu0 0.0
        %642 = vmatprep.subr.mxu0 0.0
        %643 = vmatpush1.msra.mxu0 0.0
        %644 = vmatprep.subr.mxu0 0.0
        %645 = vmatpush1.msra.mxu0 0.0
        %646 = vmatprep.subr.mxu0 0.0
        %647 = vmatpush1.msra.mxu0 0.0
        %648 = vmatprep.subr.mxu0 0.0
        %649 = vmatpush1.msra.mxu0 0.0
        %650 = vmatprep.subr.mxu0 0.0
        %651 = vmatpush1.msra.mxu0 0.0
        %652 = vmatprep.mubr.f32.mxu0 0.0
        %653 = vmatmul.mubr.f32.gmra.mrb[0].mxu0 %v250
        %v654 = vpop.f32.mrb[0].mxu0
        %v655 = vadd.f32 0.0, %v654
        %v656 = vpop.f32.mrb[0].mxu0
        %657 = vmatprep.mubr.f32.mxu0 0.0
        %658 = vmatmul.mubr.f32.gmra.mrb[0].mxu0 %v251
        %v659 = vpop.f32.mrb[0].mxu0
        %v660 = vadd.f32 0.0, %v659
        %v661 = vpop.f32.mrb[0].mxu0
        %662 = vmatprep.mubr.f32.mxu0 0.0
        %663 = vmatmul.mubr.f32.gmra.mrb[0].mxu0 %v252
        %v664 = vpop.f32.mrb[0].mxu0
        %v665 = vadd.f32 0.0, %v664
        %v666 = vpop.f32.mrb[0].mxu0
        %667 = vmatprep.mubr.f32.mxu0 0.0
        %668 = vmatmul.mubr.f32.gmra.mrb[0].mxu0 %v253
        %v669 = vpop.f32.mrb[0].mxu0
        %v670 = vadd.f32 0.0, %v669
        %v671 = vpop.f32.mrb[0].mxu0
        %672 = vmatprep.mubr.f32.mxu0 0.0
        %673 = vmatmul.mubr.f32.gmra.mrb[0].mxu0 %v254
        %v674 = vpop.f32.mrb[0].mxu0
        %v675 = vadd.f32 0.0, %v674
        %v676 = vpop.f32.mrb[0].mxu0
        %677 = vmatprep.mubr.f32.mxu0 0.0
        %678 = vmatmul.mubr.f32.gmra.mrb[0].mxu0 %v255
        %v679 = vpop.f32.mrb[0].mxu0
        %v680 = vadd.f32 0.0, %v679
        %v681 = vpop.f32.mrb[0].mxu0
        %682 = vmatprep.mubr.f32.mxu0 0.0
        %683 = vmatmul.mubr.f32.gmra.mrb[0].mxu0 %v256
        %v684 = vpop.f32.mrb[0].mxu0
        %v685 = vadd.f32 0.0, %v684
        %v686 = vpop.f32.mrb[0].mxu0
        %687 = vmatprep.mubr.f32.mxu0 0.0
        %688 = vmatmul.mubr.f32.gmra.mrb[0].mxu0 %v257
        %v689 = vpop.f32.mrb[0].mxu0
        %v690 = vadd.f32 0.0, %v689
        %v691 = vpop.f32.mrb[0].mxu0
        %692 = vmatprep.mubr.f32.mxu0 0.0
        %693 = vmatmul.mubr.f32.gmra.mrb[0].mxu0 %v258
        %v694 = vpop.f32.mrb[0].mxu0
        %v695 = vadd.f32 0.0, %v694
        %v696 = vpop.f32.mrb[0].mxu0
        %697 = vmatprep.mubr.f32.mxu0 0.0
        %698 = vmatmul.mubr.f32.gmra.mrb[0].mxu0 %v259
        %v699 = vpop.f32.mrb[0].mxu0
        %v700 = vadd.f32 0.0, %v699
        %v701 = vpop.f32.mrb[0].mxu0
        %702 = vmatprep.mubr.f32.mxu0 0.0
        %703 = vmatmul.mubr.f32.gmra.mrb[0].mxu0 %v260
        %v704 = vpop.f32.mrb[0].mxu0
        %v705 = vadd.f32 0.0, %v704
        %v706 = vpop.f32.mrb[0].mxu0
        %707 = vmatprep.mubr.f32.mxu0 0.0
        %708 = vmatmul.mubr.f32.gmra.mrb[0].mxu0 %v261
        %v709 = vpop.f32.mrb[0].mxu0
        %v710 = vadd.f32 0.0, %v709
        %v711 = vpop.f32.mrb[0].mxu0
        %712 = vmatprep.mubr.f32.mxu0 0.0
        %713 = vmatmul.mubr.f32.gmra.mrb[0].mxu0 %v262
        %v714 = vpop.f32.mrb[0].mxu0
        %v715 = vadd.f32 0.0, %v714
        %v716 = vpop.f32.mrb[0].mxu0
        %717 = vmatprep.mubr.f32.mxu0 0.0
        %718 = vmatmul.mubr.f32.gmra.mrb[0].mxu0 %v263
        %v719 = vpop.f32.mrb[0].mxu0
        %v720 = vadd.f32 0.0, %v719
        %v721 = vpop.f32.mrb[0].mxu0
        %722 = vmatprep.mubr.f32.mxu0 0.0
        %723 = vmatmul.mubr.f32.gmra.mrb[0].mxu0 %v264
        %v724 = vpop.f32.mrb[0].mxu0
        %v725 = vadd.f32 0.0, %v724
        %v726 = vpop.f32.mrb[0].mxu0
        %727 = vmatprep.mubr.f32.mxu0 0.0
        %728 = vmatmul.mubr.f32.gmra.mrb[0].mxu0 %v265
        %v729 = vpop.f32.mrb[0].mxu0
        %v730 = vadd.f32 0.0, %v729
        %v731 = vpop.f32.mrb[0].mxu0
        %732 = vdwg.mxu0
        %733 = vmatprep.subr.mxu0 0.0
        %734 = vmatpush1.xpose.msra.mxu0 %v250
        %735 = vmatprep.subr.mxu0 0.0
        %736 = vmatpush1.xpose.msra.mxu0 %v251
        %737 = vmatprep.subr.mxu0 0.0
        %738 = vmatpush1.xpose.msra.mxu0 %v252
        %739 = vmatprep.subr.mxu0 0.0
        %740 = vmatpush1.xpose.msra.mxu0 %v253
        %741 = vmatprep.subr.mxu0 0.0
        %742 = vmatpush1.xpose.msra.mxu0 %v254
        %743 = vmatprep.subr.mxu0 0.0
        %744 = vmatpush1.xpose.msra.mxu0 %v255
        %745 = vmatprep.subr.mxu0 0.0
        %746 = vmatpush1.xpose.msra.mxu0 %v256
        %747 = vmatprep.subr.mxu0 0.0
        %748 = vmatpush1.xpose.msra.mxu0 %v257
        %749 = vmatprep.subr.mxu0 0.0
        %750 = vmatpush1.xpose.msra.mxu0 %v258
        %751 = vmatprep.subr.mxu0 0.0
        %752 = vmatpush1.xpose.msra.mxu0 %v259
        %753 = vmatprep.subr.mxu0 0.0
        %754 = vmatpush1.xpose.msra.mxu0 %v260
        %755 = vmatprep.subr.mxu0 0.0
        %756 = vmatpush1.xpose.msra.mxu0 %v261
        %757 = vmatprep.subr.mxu0 0.0
        %758 = vmatpush1.xpose.msra.mxu0 %v262
        %759 = vmatprep.subr.mxu0 0.0
        %760 = vmatpush1.xpose.msra.mxu0 %v263
        %761 = vmatprep.subr.mxu0 0.0
        %762 = vmatpush1.xpose.msra.mxu0 %v264
        %763 = vmatprep.subr.mxu0 0.0
        %764 = vmatpush1.xpose.msra.mxu0 %v265
        %765 = vmatprep.subr.mxu0 0.0
        %766 = vmatpush1.xpose.msra.mxu0 0.0
        %767 = vmatprep.subr.mxu0 0.0
        %768 = vmatpush1.xpose.msra.mxu0 0.0
        %769 = vmatprep.subr.mxu0 0.0
        %770 = vmatpush1.xpose.msra.mxu0 0.0
        %771 = vmatprep.subr.mxu0 0.0
        %772 = vmatpush1.xpose.msra.mxu0 0.0
        %773 = vmatprep.subr.mxu0 0.0
        %774 = vmatpush1.xpose.msra.mxu0 0.0
        %775 = vmatprep.subr.mxu0 0.0
        %776 = vmatpush1.xpose.msra.mxu0 0.0
        %777 = vmatprep.subr.mxu0 0.0
        %778 = vmatpush1.xpose.msra.mxu0 0.0
        %779 = vmatprep.subr.mxu0 0.0
        %780 = vmatpush1.xpose.msra.mxu0 0.0
        %781 = vmatprep.subr.mxu0 0.0
        %782 = vmatpush1.xpose.msra.mxu0 0.0
        %783 = vmatprep.subr.mxu0 0.0
        %784 = vmatpush1.xpose.msra.mxu0 0.0
        %785 = vmatprep.subr.mxu0 0.0
        %786 = vmatpush1.xpose.msra.mxu0 0.0
        %787 = vmatprep.subr.mxu0 0.0
        %788 = vmatpush1.xpose.msra.mxu0 0.0
        %789 = vmatprep.subr.mxu0 0.0
        %790 = vmatpush1.xpose.msra.mxu0 0.0
        %791 = vmatprep.subr.mxu0 0.0
        %792 = vmatpush1.xpose.msra.mxu0 0.0
        %793 = vmatprep.subr.mxu0 0.0
        %794 = vmatpush1.xpose.msra.mxu0 0.0
        %795 = vmatprep.subr.mxu0 0.0
        %796 = vmatpush1.xpose.msra.mxu0 0.0
        %797 = vmatprep.mubr.f32.mxu0 0.0
        %798 = vmatmul.mubr.f32.gmra.mrb[0].mxu0 %v655
        %v799 = vpop.f32.mrb[0].mxu0
        %v800 = vadd.f32 0.0, %v799
        %v801 = vpop.f32.mrb[0].mxu0
        %802 = vmatprep.mubr.f32.mxu0 0.0
        %803 = vmatmul.mubr.f32.gmra.mrb[0].mxu0 %v660
        %v804 = vpop.f32.mrb[0].mxu0
        %v805 = vadd.f32 0.0, %v804
        %v806 = vpop.f32.mrb[0].mxu0
        %807 = vmatprep.mubr.f32.mxu0 0.0
        %808 = vmatmul.mubr.f32.gmra.mrb[0].mxu0 %v665
        %v809 = vpop.f32.mrb[0].mxu0
        %v810 = vadd.f32 0.0, %v809
        %v811 = vpop.f32.mrb[0].mxu0
        %812 = vmatprep.mubr.f32.mxu0 0.0
        %813 = vmatmul.mubr.f32.gmra.mrb[0].mxu0 %v670
        %v814 = vpop.f32.mrb[0].mxu0
        %v815 = vadd.f32 0.0, %v814
        %v816 = vpop.f32.mrb[0].mxu0
        %817 = vmatprep.mubr.f32.mxu0 0.0
        %818 = vmatmul.mubr.f32.gmra.mrb[0].mxu0 %v675
        %v819 = vpop.f32.mrb[0].mxu0
        %v820 = vadd.f32 0.0, %v819
        %v821 = vpop.f32.mrb[0].mxu0
        %822 = vmatprep.mubr.f32.mxu0 0.0
        %823 = vmatmul.mubr.f32.gmra.mrb[0].mxu0 %v680
        %v824 = vpop.f32.mrb[0].mxu0
        %v825 = vadd.f32 0.0, %v824
        %v826 = vpop.f32.mrb[0].mxu0
        %827 = vmatprep.mubr.f32.mxu0 0.0
        %828 = vmatmul.mubr.f32.gmra.mrb[0].mxu0 %v685
        %v829 = vpop.f32.mrb[0].mxu0
        %v830 = vadd.f32 0.0, %v829
        %v831 = vpop.f32.mrb[0].mxu0
        %832 = vmatprep.mubr.f32.mxu0 0.0
        %833 = vmatmul.mubr.f32.gmra.mrb[0].mxu0 %v690
        %v834 = vpop.f32.mrb[0].mxu0
        %v835 = vadd.f32 0.0, %v834
        %v836 = vpop.f32.mrb[0].mxu0
        %837 = vmatprep.mubr.f32.mxu0 0.0
        %838 = vmatmul.mubr.f32.gmra.mrb[0].mxu0 %v695
        %v839 = vpop.f32.mrb[0].mxu0
        %v840 = vadd.f32 0.0, %v839
        %v841 = vpop.f32.mrb[0].mxu0
        %842 = vmatprep.mubr.f32.mxu0 0.0
        %843 = vmatmul.mubr.f32.gmra.mrb[0].mxu0 %v700
        %v844 = vpop.f32.mrb[0].mxu0
        %v845 = vadd.f32 0.0, %v844
        %v846 = vpop.f32.mrb[0].mxu0
        %847 = vmatprep.mubr.f32.mxu0 0.0
        %848 = vmatmul.mubr.f32.gmra.mrb[0].mxu0 %v705
        %v849 = vpop.f32.mrb[0].mxu0
        %v850 = vadd.f32 0.0, %v849
        %v851 = vpop.f32.mrb[0].mxu0
        %852 = vmatprep.mubr.f32.mxu0 0.0
        %853 = vmatmul.mubr.f32.gmra.mrb[0].mxu0 %v710
        %v854 = vpop.f32.mrb[0].mxu0
        %v855 = vadd.f32 0.0, %v854
        %v856 = vpop.f32.mrb[0].mxu0
        %857 = vmatprep.mubr.f32.mxu0 0.0
        %858 = vmatmul.mubr.f32.gmra.mrb[0].mxu0 %v715
        %v859 = vpop.f32.mrb[0].mxu0
        %v860 = vadd.f32 0.0, %v859
        %v861 = vpop.f32.mrb[0].mxu0
        %862 = vmatprep.mubr.f32.mxu0 0.0
        %863 = vmatmul.mubr.f32.gmra.mrb[0].mxu0 %v720
        %v864 = vpop.f32.mrb[0].mxu0
        %v865 = vadd.f32 0.0, %v864
        %v866 = vpop.f32.mrb[0].mxu0
        %867 = vmatprep.mubr.f32.mxu0 0.0
        %868 = vmatmul.mubr.f32.gmra.mrb[0].mxu0 %v725
        %v869 = vpop.f32.mrb[0].mxu0
        %v870 = vadd.f32 0.0, %v869
        %v871 = vpop.f32.mrb[0].mxu0
        %872 = vmatprep.mubr.f32.mxu0 0.0
        %873 = vmatmul.mubr.f32.gmra.mrb[0].mxu0 %v730
        %v874 = vpop.f32.mrb[0].mxu0
        %v875 = vadd.f32 0.0, %v874
        %v876 = vpop.f32.mrb[0].mxu0
        %877 = vdwg.mxu0
        %878 = vst [vmem:[%s217] sm:$0xff] %v800
        %879 = vst [vmem:[%s217 + $0x8] sm:$0xff] %v805
        %880 = vst [vmem:[%s217 + $0x10] sm:$0xff] %v810
        %881 = vst [vmem:[%s217 + $0x18] sm:$0xff] %v815
        %882 = vst [vmem:[%s217 + $0x20] sm:$0xff] %v820
        %883 = vst [vmem:[%s217 + $0x28] sm:$0xff] %v825
        %884 = vst [vmem:[%s217 + $0x30] sm:$0xff] %v830
        %885 = vst [vmem:[%s217 + $0x38] sm:$0xff] %v835
        %886 = vst [vmem:[%s217 + $0x40] sm:$0xff] %v840
        %887 = vst [vmem:[%s217 + $0x48] sm:$0xff] %v845
        %888 = vst [vmem:[%s217 + $0x50] sm:$0xff] %v850
        %889 = vst [vmem:[%s217 + $0x58] sm:$0xff] %v855
        %890 = vst [vmem:[%s217 + $0x60] sm:$0xff] %v860
        %891 = vst [vmem:[%s217 + $0x68] sm:$0xff] %v865
        %892 = vst [vmem:[%s217 + $0x70] sm:$0xff] %v870
        %893 = vst [vmem:[%s217 + $0x78] sm:$0xff] %v875
        %s894 = sand.u32 %s97, 1
        %s895 = scalar_lea.sflag [#allocation4], %s894
        %s896 = sand.u32 %s97, 1
        %s897 = smul.addr %s896, 128
        %s898 = scalar_lea.vmem [#allocation8], %s897
        // Predicated region
        $region45: #{tpu_custom_call.1} parent=31 // pred_check
          %p899 = pneg %p107
        $region46: #{tpu_custom_call.1} parent=31 // pred_check_branch
          %901 = sbr.rel (%p899) target = $region48
        $region47: #{tpu_custom_call.1} parent=31 // pred_region
          %s903 = ssub.s32 2048, 2048
          %904 = vsyncadd %s895, %s903
          %s905 = smul.addr %s21, 16
          %s906 = smul.addr %s905, 128
          %s907 = scalar_lea.hbm %s3, %s906
          %s908 = sshll.u32 %s898, 4
          %s909 = int_to_ptr.vmem [resolvable:$true] %s908
          %914 = dma.vmem_to_hbm [thread:$0]  %s909, 2048, %s907, %s895, 128, 128, 8
        $region48: #{tpu_custom_call.1} parent=31 // pred_fallthru
          _
      $region32: #{tpu_custom_call.1} parent=5 // pred_fallthru
        _
      %p915 = scmp.le.s32.totalorder 2, %s16
      // Predicated region
      $region49: #{tpu_custom_call.1} parent=5 // pred_check
        %p916 = pneg %p915
      $region50: #{tpu_custom_call.1} parent=5 // pred_check_branch
        %918 = sbr.rel (%p916) target = $region52
      $region51: #{tpu_custom_call.1} parent=5 // pred_region
        %s919 = ssub.s32 %s16, 2
        // Predicated region
        $region53: #{tpu_custom_call.1} parent=51 // pred_check
          %p920 = pneg %p113
        $region54: #{tpu_custom_call.1} parent=51 // pred_check_branch
          %922 = sbr.rel (%p920) target = $region56
        $region55: #{tpu_custom_call.1} parent=51 // pred_region
          %s923 = sand.u32 %s98, 1
          %s924 = scalar_lea.sflag [#allocation4], %s923
          %s925 = sand.u32 %s98, 1
          %s926 = smul.addr %s925, 128
          %s927 = scalar_lea.vmem [#allocation8], %s926
          %928 = dma.done %s924, 2048
        $region56: #{tpu_custom_call.1} parent=51 // pred_fallthru
          _
      $region52: #{tpu_custom_call.1} parent=5 // pred_fallthru
        _
    $region6: #{tpu_custom_call.1} parent=1 // loop_footer
      %s20 = sadd.s32 1, %s16
    $region7: #{tpu_custom_call.1} parent=1 // loop_footer_branch
      %15 = sbr.rel target = $region3
    $region8: #{tpu_custom_call.1} parent=1 // loop_exit
      _
    %929 = vsyncpa [#allocation3], 1
    %s930 = scalar_lea.sflag [#allocation3], 1
    %931 = vsyncpa %s930, 1
    %932 = vsyncpa [#allocation6], 1
    %933 = vsyncpa [#allocation4], 1
    %s934 = scalar_lea.sflag [#allocation4], 1
    %935 = vsyncpa %s934, 1

</llo_original>
